<compile_context>
chip_gen: v7x
topology: tpu7x:2x2x1
jax: 0.10.0
libtpu: 0.0.40
codegen_flags: <defaults>
</compile_context>

<pallas_src>
import jax
import jax.numpy as jnp
import numpy as np
from jax.experimental import pallas as pl
from jax.experimental.pallas import tpu as pltpu


def _policy_kernel(cw_ref, shift_ref, x_ref, fcw_ref, fcb_ref, o_ref):
    # cw_ref:    (C,)         SMEM   folded conv weight  (conv_w * bn_scale)
    # shift_ref: (1,)         SMEM   folded scalar shift ((conv_b - bn_mean)*scale + beta)
    # x_ref:     (TB, C, S)   VMEM   input tile, natural NCHW-flattened layout
    # fcw_ref:   (S, P_pad)   VMEM   Linear weight (transposed, lane-padded), resident
    # fcb_ref:   (1, P_pad)   VMEM   Linear bias (padded cols = -1e30), resident
    # o_ref:     (TB, P_pad)  VMEM   softmax probabilities (lane-dense store)
    C = x_ref.shape[1]
    xv = x_ref[...]                                   # (TB, C, S) in x's streaming dtype

    # 1x1 conv as per-channel scalar-FMA (VALU work only, no cross-lane reduce).
    # Channels are split across up to 4 independent accumulation chains so the
    # 4 VALU slots per bundle stay busy when C is large.
    # TODO(synk): switch the Python unroll to lax.fori_loop(..., unroll=8) for very large C.
    n_chains = min(4, C)
    parts = []
    for lead in range(n_chains):
        p = xv[:, lead, :].astype(jnp.float32) * cw_ref[lead]
        for c in range(lead + n_chains, C, n_chains):
            p = p + xv[:, c, :].astype(jnp.float32) * cw_ref[c]
        parts.append(p)
    acc = parts[0]
    for p in parts[1:]:
        acc = acc + p

    # Folded conv-bias + BatchNorm(eval) affine, then ReLU.
    h = jnp.maximum(acc + shift_ref[0], 0.0)                               # (TB, S) f32

    # Linear on the MXU (bf16 operands if the wrapper passed bf16 weights; f32 acc).
    w = fcw_ref[...]
    logits = jnp.dot(h.astype(w.dtype), w,
                     preferred_element_type=jnp.float32) + fcb_ref[...]    # (TB, P_pad)

    # log_softmax(dim=1).exp() == softmax(dim=1).  Padded lanes carry -1e30 bias -> ~0 mass.
    m = jnp.max(logits, axis=1, keepdims=True)
    e = jnp.exp(logits - m)
    denom = jnp.sum(e, axis=1, keepdims=True)
    # EUP approximate reciprocal + one Newton refinement: full f32 precision without a
    # VPU divide (keeps the VALU slots free for the conv-FMA phase).
    r = pl.reciprocal(denom, approx=True)
    r = r * (2.0 - denom * r)
    o_ref[...] = e * r


def _round_up(v, m):
    return -(-v // m) * m


def _choose_tb(B, C, S, P_pad, x_itemsize, w_itemsize, vmem_budget_bytes):
    """Pick a batch tile TB (multiple of 8) from *padded* VMEM footprints.

    Counts (8/16, 128) tile padding on the last two dims of every block and the
    default double-buffering Pallas allocates for each pipelined operand (including
    the constant-index resident weights).
    """
    x_sub = 8 if x_itemsize >= 4 else 16              # sublane packing of the x tile
    w_sub = 8 if w_itemsize >= 4 else 16
    S_pad = _round_up(S, 128)                         # x tile lane padding
    C_pad = _round_up(C, x_sub)                       # x tile sublane padding

    fcw_bytes = _round_up(S, w_sub) * P_pad * w_itemsize
    fcb_bytes = 8 * P_pad * 4
    resident = 2 * (fcw_bytes + fcb_bytes)            # double-buffered even if constant-index

    per_row = 2 * C_pad * S_pad * x_itemsize + 2 * P_pad * 4   # x tile + out tile, 2-deep
    tb = (vmem_budget_bytes - resident) // per_row
    tb = int(max(8, min(2048, tb)))                   # cap lifted (was 256); big TB -> HBM roofline
    tb -= tb % 8

    b8 = _round_up(B, 8)
    tb = max(8, min(tb, b8))

    # v7x megacore: keep >= 2 grid steps so dimension_semantics=("parallel",) can shard
    # the batch axis across both TensorCores (no-op on single-TC v5e/v6e).
    if b8 >= 16:
        half = (b8 // 2) - (b8 // 2) % 8
        tb = min(tb, max(8, half))
    return tb


def policy_net_forward(x_nchw, params, eps=1e-5, use_bf16_matmul=False,
                       stream_x_bf16=False, vmem_budget_bytes=16 << 20):
    B, C, H, W = x_nchw.shape
    S = H * W
    P = params["fc_w"].shape[0]                        # outplanes
    assert S == P - 1, "view(-1, outplanes-1) requires H*W == outplanes-1"

    # --- fold conv bias + BatchNorm(eval) affine into (cw, shift) ------------------
    scale = params["bn_gamma"][0] / jnp.sqrt(params["bn_var"][0] + eps)
    cw = (params["conv_w"] * scale).astype(jnp.float32)                       # (C,)
    shift = (params["conv_b"][0] - params["bn_mean"][0]) * scale + params["bn_beta"][0]
    shift = jnp.reshape(shift, (1,)).astype(jnp.float32)                      # (1,)

    # --- lane-dense padding of the Linear output dimension -------------------------
    P_pad = max(128, _round_up(P, 128))
    w_dtype = jnp.bfloat16 if use_bf16_matmul else jnp.float32
    fcw = jnp.zeros((S, P_pad), w_dtype).at[:, :P].set(params["fc_w"].T.astype(w_dtype))
    fcb = jnp.full((1, P_pad), -1e30, jnp.float32).at[0, :P].set(
        params["fc_b"].astype(jnp.float32))

    # --- batch tiling (natural layout, no HBM transpose) ----------------------------
    x_dtype = jnp.bfloat16 if stream_x_bf16 else jnp.float32
    x = x_nchw.reshape(B, C, S).astype(x_dtype)        # contiguous reshape; no extra HBM pass
    TB = _choose_tb(B, C, S, P_pad,
                    jnp.dtype(x_dtype).itemsize, jnp.dtype(w_dtype).itemsize,
                    vmem_budget_bytes)
    B_pad = _round_up(B, TB)
    if B_pad != B:
        x = jnp.pad(x, ((0, B_pad - B), (0, 0), (0, 0)))
    grid = (B_pad // TB,)

    smem = pl.BlockSpec(memory_space=pltpu.MemorySpace.SMEM)
    out = pl.pallas_call(
        _policy_kernel,
        out_shape=jax.ShapeDtypeStruct((B_pad, P_pad), jnp.float32),
        grid=grid,
        in_specs=[
            smem,                                                    # cw    (C,)   SMEM
            smem,                                                    # shift (1,)   SMEM
            pl.BlockSpec((TB, C, S), lambda i: (i, 0, 0)),           # x tile (pipelined)
            pl.BlockSpec((S, P_pad), lambda i: (0, 0)),              # fcw   (resident)
            pl.BlockSpec((1, P_pad), lambda i: (0, 0)),              # fcb   (resident)
        ],
        out_specs=pl.BlockSpec((TB, P_pad), lambda i: (i, 0)),
        compiler_params=pltpu.CompilerParams(
            dimension_semantics=("parallel",),                       # 2-TC shard on v7x
            vmem_limit_bytes=min(vmem_budget_bytes + (8 << 20), 48 << 20)),
    )(cw, shift, x, fcw, fcb)

    return out[:B, :P]


def policy_net_reference(x_nchw, params, eps=1e-5):
    """Pure-JAX reference of the PyTorch forward (BN in eval mode)."""
    B, C, H, W = x_nchw.shape
    P = params["fc_w"].shape[0]
    conv = jnp.einsum("bchw,c->bhw", x_nchw, params["conv_w"]) + params["conv_b"][0]
    bn = (conv - params["bn_mean"][0]) / jnp.sqrt(params["bn_var"][0] + eps)
    bn = bn * params["bn_gamma"][0] + params["bn_beta"][0]
    h = jnp.maximum(bn, 0.0).reshape(-1, P - 1)
    logits = h @ params["fc_w"].T + params["fc_b"]
    logits = logits - jax.scipy.special.logsumexp(logits, axis=1, keepdims=True)
    return jnp.exp(logits)


def make_params(key, inplanes, outplanes):
    k = jax.random.split(key, 4)
    P = outplanes
    return {
        # nn.Conv2d(inplanes, 1, kernel_size=1): weight (1, inplanes, 1, 1) -> (inplanes,)
        "conv_w": (jax.random.normal(k[0], (inplanes,), jnp.float32) * 0.3),
        "conv_b": jnp.array([0.05], jnp.float32),
        # nn.BatchNorm2d(1): eval-mode running stats + affine params
        "bn_gamma": jnp.array([1.2], jnp.float32),
        "bn_beta": jnp.array([0.1], jnp.float32),
        "bn_mean": jnp.array([0.05], jnp.float32),
        "bn_var": jnp.array([0.9], jnp.float32),
        # nn.Linear(outplanes-1, outplanes): weight (P, P-1), bias (P,)
        "fc_w": (jax.random.normal(k[1], (P, P - 1), jnp.float32) * (1.0 / jnp.sqrt(P - 1))),
        "fc_b": (jax.random.normal(k[2], (P,), jnp.float32) * 0.1),
    }


if __name__ == "__main__":
    # Small shapes consistent with the module: H*W must equal outplanes-1.
    B, inplanes, H, W = 2, 4, 8, 8
    outplanes = H * W + 1            # 65

    key = jax.random.PRNGKey(0)
    kx, kp = jax.random.split(key)
    x = jax.random.normal(kx, (B, inplanes, H, W), jnp.float32)
    params = make_params(kp, inplanes, outplanes)

    ref = policy_net_reference(x, params)

    # f32 path (exact-semantics default, 1e-5 tolerance).
    out = jax.block_until_ready(policy_net_forward(x, params))
    assert out.shape == (B, outplanes)
    np.testing.assert_allclose(np.asarray(out), np.asarray(ref), rtol=1e-5, atol=1e-5)
    np.testing.assert_allclose(np.asarray(out).sum(axis=1), np.ones(B), rtol=1e-5, atol=1e-5)

    # Fast path: bf16 x stream (halved HBM bytes on the dominant input) + bf16 MXU
    # operands with f32 accumulation.  Looser tolerance for the bf16 rounding.
    out_fast = jax.block_until_ready(
        policy_net_forward(x, params, use_bf16_matmul=True, stream_x_bf16=True))
    np.testing.assert_allclose(np.asarray(out_fast), np.asarray(ref), rtol=0, atol=2e-2)

    print("KERNEL_OK")
</pallas_src>

<mosaic_0001>
module attributes {stable_mosaic.version = 11 : i64} {
  func.func @_policy_kernel(%arg0: i32, %arg1: memref<4xf32, #tpu.memory_space<smem>>, %arg2: memref<1xf32, #tpu.memory_space<smem>>, %arg3: memref<8x4x64xf32, #tpu.memory_space<vmem>>, %arg4: memref<64x128xf32, #tpu.memory_space<vmem>>, %arg5: memref<1x128xf32, #tpu.memory_space<vmem>>, %arg6: memref<8x128xf32, #tpu.memory_space<vmem>>) attributes {dimension_semantics = [#tpu.dimension_semantics<parallel>], iteration_bounds = array<i64: 1>, scalar_prefetch = 0 : i64, scratch_operands = 0 : i64, tpu.core_type = #tpu.core_type<tc>, window_params = [{transform_indices = @transform_0, window_bounds = array<i64: 4>}, {transform_indices = @transform_1, window_bounds = array<i64: 1>}, {transform_indices = @transform_2, window_bounds = array<i64: 8, 4, 64>}, {pipeline_mode = #tpu.pipeline_mode<synchronous>, transform_indices = @transform_3, window_bounds = array<i64: 64, 128>}, {pipeline_mode = #tpu.pipeline_mode<synchronous>, transform_indices = @transform_4, window_bounds = array<i64: 1, 128>}, {transform_indices = @transform_5, window_bounds = array<i64: 8, 128>}]} {
    %c0 = arith.constant 0 : index
    %c0_0 = arith.constant 0 : index
    %c0_1 = arith.constant 0 : index
    %0 = vector.load %arg3[%c0, %c0_0, %c0_1] : memref<8x4x64xf32, #tpu.memory_space<vmem>>, vector<8x4x64xf32>
    %1 = vector.extract_strided_slice %0 {offsets = [0, 0, 0], sizes = [8, 1, 64], strides = [1, 1, 1]} : vector<8x4x64xf32> to vector<8x1x64xf32>
    %2 = vector.shape_cast %1 : vector<8x1x64xf32> to vector<8x64xf32>
    %c0_2 = arith.constant 0 : index
    %3 = memref.load %arg1[%c0_2] : memref<4xf32, #tpu.memory_space<smem>>
    %4 = vector.broadcast %3 : f32 to vector<8x64xf32>
    %5 = arith.mulf %2, %4 : vector<8x64xf32>
    %6 = vector.extract_strided_slice %0 {offsets = [0, 1, 0], sizes = [8, 1, 64], strides = [1, 1, 1]} : vector<8x4x64xf32> to vector<8x1x64xf32>
    %7 = vector.shape_cast %6 : vector<8x1x64xf32> to vector<8x64xf32>
    %c1 = arith.constant 1 : index
    %8 = memref.load %arg1[%c1] : memref<4xf32, #tpu.memory_space<smem>>
    %9 = vector.broadcast %8 : f32 to vector<8x64xf32>
    %10 = arith.mulf %7, %9 : vector<8x64xf32>
    %11 = vector.extract_strided_slice %0 {offsets = [0, 2, 0], sizes = [8, 1, 64], strides = [1, 1, 1]} : vector<8x4x64xf32> to vector<8x1x64xf32>
    %12 = vector.shape_cast %11 : vector<8x1x64xf32> to vector<8x64xf32>
    %c2 = arith.constant 2 : index
    %13 = memref.load %arg1[%c2] : memref<4xf32, #tpu.memory_space<smem>>
    %14 = vector.broadcast %13 : f32 to vector<8x64xf32>
    %15 = arith.mulf %12, %14 : vector<8x64xf32>
    %16 = vector.extract_strided_slice %0 {offsets = [0, 3, 0], sizes = [8, 1, 64], strides = [1, 1, 1]} : vector<8x4x64xf32> to vector<8x1x64xf32>
    %17 = vector.shape_cast %16 : vector<8x1x64xf32> to vector<8x64xf32>
    %c3 = arith.constant 3 : index
    %18 = memref.load %arg1[%c3] : memref<4xf32, #tpu.memory_space<smem>>
    %19 = vector.broadcast %18 : f32 to vector<8x64xf32>
    %20 = arith.mulf %17, %19 : vector<8x64xf32>
    %21 = arith.addf %5, %10 : vector<8x64xf32>
    %22 = arith.addf %21, %15 : vector<8x64xf32>
    %23 = arith.addf %22, %20 : vector<8x64xf32>
    %c0_3 = arith.constant 0 : index
    %24 = memref.load %arg2[%c0_3] : memref<1xf32, #tpu.memory_space<smem>>
    %25 = vector.broadcast %24 : f32 to vector<8x64xf32>
    %26 = arith.addf %23, %25 : vector<8x64xf32>
    %cst = arith.constant 0.000000e+00 : f32
    %27 = vector.broadcast %cst : f32 to vector<8x64xf32>
    %28 = arith.maximumf %26, %27 : vector<8x64xf32>
    %c0_4 = arith.constant 0 : index
    %c0_5 = arith.constant 0 : index
    %29 = vector.load %arg4[%c0_4, %c0_5] : memref<64x128xf32, #tpu.memory_space<vmem>>, vector<64x128xf32>
    %cst_6 = arith.constant dense<0.000000e+00> : vector<8x128xf32>
    %30 = tpu.matmul %28, %29, %cst_6 {dimension_numbers = #tpu.dot_dimension_numbers<[1], [0], [0], [1], [0, 0, 1, 1], [], []>} : vector<8x64xf32>, vector<64x128xf32>, vector<8x128xf32> -> vector<8x128xf32>
    %c0_7 = arith.constant 0 : index
    %c0_8 = arith.constant 0 : index
    %31 = vector.load %arg5[%c0_7, %c0_8] : memref<1x128xf32, #tpu.memory_space<vmem>>, vector<1x128xf32>
    %32 = vector.broadcast %31 : vector<1x128xf32> to vector<8x128xf32>
    %33 = arith.addf %30, %32 : vector<8x128xf32>
    %cst_9 = arith.constant dense<0xFF800000> : vector<8xf32>
    %34 = vector.multi_reduction <maximumf>, %33, %cst_9 [1] : vector<8x128xf32> to vector<8xf32>
    %35 = vector.shape_cast %34 : vector<8xf32> to vector<8x1xf32>
    %36 = vector.broadcast %35 : vector<8x1xf32> to vector<8x128xf32>
    %37 = arith.subf %33, %36 : vector<8x128xf32>
    %38 = math.exp %37 : vector<8x128xf32>
    %cst_10 = arith.constant dense<0.000000e+00> : vector<8xf32>
    %39 = vector.multi_reduction <add>, %38, %cst_10 [1] : vector<8x128xf32> to vector<8xf32>
    %40 = vector.shape_cast %39 : vector<8xf32> to vector<8x1xf32>
    %41 = tpu.reciprocal %40 {approx = true} : vector<8x1xf32> -> vector<8x1xf32>
    %42 = arith.mulf %40, %41 : vector<8x1xf32>
    %cst_11 = arith.constant 2.000000e+00 : f32
    %43 = vector.broadcast %cst_11 : f32 to vector<8x1xf32>
    %44 = arith.subf %43, %42 : vector<8x1xf32>
    %45 = arith.mulf %41, %44 : vector<8x1xf32>
    %46 = vector.broadcast %45 : vector<8x1xf32> to vector<8x128xf32>
    %47 = arith.mulf %38, %46 : vector<8x128xf32>
    %c0_12 = arith.constant 0 : index
    %c0_13 = arith.constant 0 : index
    %48 = vector.load %arg6[%c0_12, %c0_13] : memref<8x128xf32, #tpu.memory_space<vmem>>, vector<8x128xf32>
    tpu.vector_store %arg6[%c0_12, %c0_13], %47 {strides = array<i32>} : memref<8x128xf32, #tpu.memory_space<vmem>>, vector<8x128xf32>,
    return
  }
  func.func @transform_0(%arg0: i32) -> i32 {
    %c0_i32 = arith.constant 0 : i32
    %c0_i32_0 = arith.constant 0 : i32
    return %c0_i32 : i32
  }
  func.func @transform_1(%arg0: i32) -> i32 {
    %c0_i32 = arith.constant 0 : i32
    %c0_i32_0 = arith.constant 0 : i32
    return %c0_i32 : i32
  }
  func.func @transform_2(%arg0: i32) -> (i32, i32, i32) {
    %c0_i32 = arith.constant 0 : i32
    %c0_i32_0 = arith.constant 0 : i32
    %c0_i32_1 = arith.constant 0 : i32
    return %arg0, %c0_i32, %c0_i32_0 : i32, i32, i32
  }
  func.func @transform_3(%arg0: i32) -> (i32, i32) {
    %c0_i32 = arith.constant 0 : i32
    %c0_i32_0 = arith.constant 0 : i32
    %c0_i32_1 = arith.constant 0 : i32
    return %c0_i32, %c0_i32_0 : i32, i32
  }
  func.func @transform_4(%arg0: i32) -> (i32, i32) {
    %c0_i32 = arith.constant 0 : i32
    %c0_i32_0 = arith.constant 0 : i32
    %c0_i32_1 = arith.constant 0 : i32
    return %c0_i32, %c0_i32_0 : i32, i32
  }
  func.func @transform_5(%arg0: i32) -> (i32, i32) {
    %c0_i32 = arith.constant 0 : i32
    %c0_i32_0 = arith.constant 0 : i32
    return %arg0, %c0_i32 : i32, i32
  }
}

</mosaic_0001>

<llo_original>
// kernel: tpu_custom_call.1
$region0: #{tpu_custom_call.1}
  #allocation0 [shape = 'u32[]', space=smem, size = 0x4, offset = 0x4, fixed_abs, tag = 'smem constant byte address 0x4 - core index']
  #allocation1 [shape = 'u32[144,128]{1,0:T(1,128)}', space=vmem, size = 0x12000, scoped, tag = 'internal scratch']
  #allocation2 [shape = 'f32[1]{0:T(128)S(6)}', space=smem, size = 0x200, scoped, tag = 'scoped memory for tpu_custom_call.1']
  %s0 = inlined_call_operand.vmem [shape: f32[4], index: 0, kind: input, shape index: {}]
  %s1 = inlined_call_operand.<no memory space> [shape: f32[1], index: 1, kind: input, shape index: {}]
  %s2 = inlined_call_operand.hbm [shape: f32[8,4,64], index: 2, kind: input, shape index: {}]
  %s3 = inlined_call_operand.hbm [shape: f32[64,128], index: 3, kind: input, shape index: {}]
  %s4 = inlined_call_operand.vmem [shape: f32[1,128], index: 4, kind: input, shape index: {}]
  %s5 = inlined_call_operand.hbm [shape: f32[8,128], index: 5, kind: output, shape index: {}]
  %s6 = sld [smem:[#allocation0]]
  $region42: #{tpu_custom_call.1} parent=0
    _
  %s8 = ssub.s32 1, %s6
  %s9 = scalar_select 0, %s8, %s6
  %10 = sst [smem:[#allocation2]] %s1
  $region1: #{tpu_custom_call.1} parent=0
    #allocation3 [shape = 'u8[512]{0}', space=smem, size = 0x200, scoped, tag = 'input window, operand 0, single buffered']
    #allocation4 [shape = 's32[1]{0}', space=sflag, size = 0x4, scoped, tag = 'scoped memory for tpu_custom_call.1']
    #allocation5 [shape = 's32[1]{0}', space=sflag, size = 0x4, scoped, tag = 'scoped memory for tpu_custom_call.1']
    #allocation6 [shape = 's32[1]{0}', space=sflag, size = 0x4, scoped, tag = 'scoped memory for tpu_custom_call.1']
    #allocation7 [shape = 'u8[16384]{0}', space=vmem, size = 0x4000, scoped, tag = 'input window, operand 2, single buffered']
    #allocation8 [shape = 'u8[32768]{0}', space=vmem, size = 0x8000, scoped, tag = 'input window, operand 3, single buffered']
    #allocation9 [shape = 's32[1]{0}', space=sflag, size = 0x4, scoped, tag = 'scoped memory for tpu_custom_call.1']
    #allocation10 [shape = 'u8[4096]{0}', space=vmem, size = 0x1000, scoped, tag = 'output window, operand 0, single buffered']
    %11 = vsyncpa [#allocation6], 0
    %12 = vsyncpa [#allocation4], 0
    %13 = vsyncpa [#allocation9], 0
    %14 = vsyncpa [#allocation5], 0
    // Predicated region
    $region2: #{tpu_custom_call.1} parent=1 // pred_check
      _
    $region3: #{tpu_custom_call.1} parent=1 // pred_check_branch
      %16 = sbr.rel (0) target = $region5
    $region4: #{tpu_custom_call.1} parent=1 // pred_region
      %s18 = ssub.s32 16, 16
      %19 = vsyncadd [#allocation6], %s18
      %s21 = sshll.u32 %s0, 4
      %s22 = int_to_ptr.vmem [resolvable:$true] %s21
      %24 = dma.vmem_to_smem %s22, 16, [#allocation3], [#allocation6]
    $region5: #{tpu_custom_call.1} parent=1 // pred_fallthru
      _
    // Predicated region
    $region6: #{tpu_custom_call.1} parent=1 // pred_check
      _
    $region7: #{tpu_custom_call.1} parent=1 // pred_check_branch
      %26 = sbr.rel (0) target = $region9
    $region8: #{tpu_custom_call.1} parent=1 // pred_region
      _
    $region9: #{tpu_custom_call.1} parent=1 // pred_fallthru
      _
    // Predicated region
    $region10: #{tpu_custom_call.1} parent=1 // pred_check
      _
    $region11: #{tpu_custom_call.1} parent=1 // pred_check_branch
      %28 = sbr.rel (0) target = $region13
    $region12: #{tpu_custom_call.1} parent=1 // pred_region
      %s30 = ssub.s32 512, 512
      %31 = vsyncadd [#allocation4], %s30
      %s32 = sshll.u32 [#allocation7], 4
      %s33 = int_to_ptr.vmem [resolvable:$true] %s32
      %38 = dma.hbm_to_vmem [thread:$0]  %s2, 512, %s33, [#allocation4], 64, 64, 4
    $region13: #{tpu_custom_call.1} parent=1 // pred_fallthru
      _
    // Predicated region
    $region14: #{tpu_custom_call.1} parent=1 // pred_check
      _
    $region15: #{tpu_custom_call.1} parent=1 // pred_check_branch
      %40 = sbr.rel (0) target = $region17
    $region16: #{tpu_custom_call.1} parent=1 // pred_region
      %s42 = ssub.s32 1024, 1024
      %43 = vsyncadd [#allocation9], %s42
      %s44 = sshll.u32 [#allocation8], 4
      %s45 = int_to_ptr.vmem [resolvable:$true] %s44
      %50 = dma.hbm_to_vmem [thread:$0]  %s3, 1024, %s45, [#allocation9], 128, 128, 8
    $region17: #{tpu_custom_call.1} parent=1 // pred_fallthru
      _
    // Predicated region
    $region18: #{tpu_custom_call.1} parent=1 // pred_check
      _
    $region19: #{tpu_custom_call.1} parent=1 // pred_check_branch
      %52 = sbr.rel (0) target = $region21
    $region20: #{tpu_custom_call.1} parent=1 // pred_region
      _
    $region21: #{tpu_custom_call.1} parent=1 // pred_fallthru
      _
    // Predicated region
    $region22: #{tpu_custom_call.1} parent=1 // pred_check
      _
    $region23: #{tpu_custom_call.1} parent=1 // pred_check_branch
      %54 = sbr.rel (0) target = $region25
    $region24: #{tpu_custom_call.1} parent=1 // pred_region
      %55 = dma.done [#allocation6], 16
    $region25: #{tpu_custom_call.1} parent=1 // pred_fallthru
      _
    // Predicated region
    $region26: #{tpu_custom_call.1} parent=1 // pred_check
      _
    $region27: #{tpu_custom_call.1} parent=1 // pred_check_branch
      %57 = sbr.rel (0) target = $region29
    $region28: #{tpu_custom_call.1} parent=1 // pred_region
      %58 = dma.done [#allocation4], 512
    $region29: #{tpu_custom_call.1} parent=1 // pred_fallthru
      _
    // Predicated region
    $region30: #{tpu_custom_call.1} parent=1 // pred_check
      _
    $region31: #{tpu_custom_call.1} parent=1 // pred_check_branch
      %60 = sbr.rel (0) target = $region33
    $region32: #{tpu_custom_call.1} parent=1 // pred_region
      %61 = dma.done [#allocation9], 1024
    $region33: #{tpu_custom_call.1} parent=1 // pred_fallthru
      _
    %62 = sfence
    %v63 = vld [vmem:[#allocation7] sm:$0xf]
    %v64 = vld [vmem:[#allocation7 + $0x4] sm:$0xf]
    %v65 = vld [vmem:[#allocation7 + $0x8] sm:$0xf]
    %v66 = vld [vmem:[#allocation7 + $0xc] sm:$0xf]
    %v67 = vld [vmem:[#allocation7 + $0x10] sm:$0xf]
    %v68 = vld [vmem:[#allocation7 + $0x14] sm:$0xf]
    %v69 = vld [vmem:[#allocation7 + $0x18] sm:$0xf]
    %v70 = vld [vmem:[#allocation7 + $0x1c] sm:$0xf]
    %s71 = sld [smem:[#allocation3]]
    %v72 = vstv %s71
    %v73 = vmul.f32 %v63, %v72
    %v74 = vmul.f32 %v64, %v72
    %v75 = vmul.f32 %v65, %v72
    %v76 = vmul.f32 %v66, %v72
    %v77 = vmul.f32 %v67, %v72
    %v78 = vmul.f32 %v68, %v72
    %v79 = vmul.f32 %v69, %v72
    %v80 = vmul.f32 %v70, %v72
    %s81 = sld [smem:[#allocation3 + $0x1]]
    %v82 = vstv %s81
    %v83 = vmul.f32 %v63, %v82
    %v84 = vmul.f32 %v64, %v82
    %v85 = vmul.f32 %v65, %v82
    %v86 = vmul.f32 %v66, %v82
    %v87 = vmul.f32 %v67, %v82
    %v88 = vmul.f32 %v68, %v82
    %v89 = vmul.f32 %v69, %v82
    %v90 = vmul.f32 %v70, %v82
    %s91 = sld [smem:[#allocation3 + $0x2]]
    %v92 = vstv %s91
    %v93 = vmul.f32 %v63, %v92
    %v94 = vmul.f32 %v64, %v92
    %v95 = vmul.f32 %v65, %v92
    %v96 = vmul.f32 %v66, %v92
    %v97 = vmul.f32 %v67, %v92
    %v98 = vmul.f32 %v68, %v92
    %v99 = vmul.f32 %v69, %v92
    %v100 = vmul.f32 %v70, %v92
    %s101 = sld [smem:[#allocation3 + $0x3]]
    %v102 = vstv %s101
    %v103 = vmul.f32 %v63, %v102
    %v104 = vmul.f32 %v64, %v102
    %v105 = vmul.f32 %v65, %v102
    %v106 = vmul.f32 %v66, %v102
    %v107 = vmul.f32 %v67, %v102
    %v108 = vmul.f32 %v68, %v102
    %v109 = vmul.f32 %v69, %v102
    %v110 = vmul.f32 %v70, %v102
    %v119 = vrot.slane %v83, 1
    %v120 = vrot.slane %v84, 1
    %v121 = vrot.slane %v85, 1
    %v122 = vrot.slane %v86, 1
    %v123 = vrot.slane %v87, 1
    %v124 = vrot.slane %v88, 1
    %v125 = vrot.slane %v89, 1
    %v126 = vrot.slane %v90, 1
    %v135 = vadd.f32 %v73, %v119
    %v136 = vadd.f32 %v74, %v120
    %v137 = vadd.f32 %v75, %v121
    %v138 = vadd.f32 %v76, %v122
    %v139 = vadd.f32 %v77, %v123
    %v140 = vadd.f32 %v78, %v124
    %v141 = vadd.f32 %v79, %v125
    %v142 = vadd.f32 %v80, %v126
    %v151 = vrot.slane %v93, 2
    %v152 = vrot.slane %v94, 2
    %v153 = vrot.slane %v95, 2
    %v154 = vrot.slane %v96, 2
    %v155 = vrot.slane %v97, 2
    %v156 = vrot.slane %v98, 2
    %v157 = vrot.slane %v99, 2
    %v158 = vrot.slane %v100, 2
    %v167 = vadd.f32 %v135, %v151
    %v168 = vadd.f32 %v136, %v152
    %v169 = vadd.f32 %v137, %v153
    %v170 = vadd.f32 %v138, %v154
    %v171 = vadd.f32 %v139, %v155
    %v172 = vadd.f32 %v140, %v156
    %v173 = vadd.f32 %v141, %v157
    %v174 = vadd.f32 %v142, %v158
    %v183 = vrot.slane %v103, 3
    %v184 = vrot.slane %v104, 3
    %v185 = vrot.slane %v105, 3
    %v186 = vrot.slane %v106, 3
    %v187 = vrot.slane %v107, 3
    %v188 = vrot.slane %v108, 3
    %v189 = vrot.slane %v109, 3
    %v190 = vrot.slane %v110, 3
    %v199 = vadd.f32 %v167, %v183
    %v200 = vadd.f32 %v168, %v184
    %v201 = vadd.f32 %v169, %v185
    %v202 = vadd.f32 %v170, %v186
    %v203 = vadd.f32 %v171, %v187
    %v204 = vadd.f32 %v172, %v188
    %v205 = vadd.f32 %v173, %v189
    %v206 = vadd.f32 %v174, %v190
    %s207 = sld [smem:[#allocation2]]
    %v208 = vstv %s207
    %v209 = vadd.f32 %v199, %v208
    %v210 = vadd.f32 %v200, %v208
    %v211 = vadd.f32 %v201, %v208
    %v212 = vadd.f32 %v202, %v208
    %v213 = vadd.f32 %v203, %v208
    %v214 = vadd.f32 %v204, %v208
    %v215 = vadd.f32 %v205, %v208
    %v216 = vadd.f32 %v206, %v208
    %v217 = vmax.f32 %v209, 0.0
    %v218 = vmax.f32 %v210, 0.0
    %v219 = vmax.f32 %v211, 0.0
    %v220 = vmax.f32 %v212, 0.0
    %v221 = vmax.f32 %v213, 0.0
    %v222 = vmax.f32 %v214, 0.0
    %v223 = vmax.f32 %v215, 0.0
    %v224 = vmax.f32 %v216, 0.0
    %v225 = vld [vmem:[#allocation8] sm:$0xff]
    %v226 = vld [vmem:[#allocation8 + $0x8] sm:$0xff]
    %v227 = vld [vmem:[#allocation8 + $0x10] sm:$0xff]
    %v228 = vld [vmem:[#allocation8 + $0x18] sm:$0xff]
    %v229 = vld [vmem:[#allocation8 + $0x20] sm:$0xff]
    %v230 = vld [vmem:[#allocation8 + $0x28] sm:$0xff]
    %v231 = vld [vmem:[#allocation8 + $0x30] sm:$0xff]
    %v232 = vld [vmem:[#allocation8 + $0x38] sm:$0xff]
    %v233 = vld [vmem:[%s4] sm:$0x1]
    %v235 = vlaneseq
    %v236 = vshrl.u32 %v235, 7
    %v237 = vsub.s32 0, %v236
    %v238 = vrot.slane %v233, %v237
    %v248 = vrot.slane %v218, 7
    %vm249 = vcmask 1041409
    %v250 = vsel %vm249, %v248, %v217
    %v251 = vrot.slane %v219, 6
    %vm252 = vcmask 1042434
    %v253 = vsel %vm252, %v251, %v250
    %v254 = vrot.slane %v220, 5
    %vm255 = vcmask 1043459
    %v256 = vsel %vm255, %v254, %v253
    %v257 = vrot.slane %v221, 4
    %vm258 = vcmask 1044484
    %v259 = vsel %vm258, %v257, %v256
    %v260 = vrot.slane %v222, 3
    %vm261 = vcmask 1045509
    %v262 = vsel %vm261, %v260, %v259
    %v263 = vrot.slane %v223, 2
    %vm264 = vcmask 1046534
    %v265 = vsel %vm264, %v263, %v262
    %v266 = vrot.slane %v224, 1
    %vm267 = vcmask 1047559
    %v268 = vsel %vm267, %v266, %v265
    %vm269 = vcmask 523264
    %v270 = vsel %vm269, %v268, 0
    %272 = vmatprep.subr.mxu0 0.0
    %273 = vmatpush1.msra.mxu0 %v225
    %274 = vmatprep.subr.mxu0 0.0
    %275 = vmatpush1.msra.mxu0 %v226
    %276 = vmatprep.subr.mxu0 0.0
    %277 = vmatpush1.msra.mxu0 %v227
    %278 = vmatprep.subr.mxu0 0.0
    %279 = vmatpush1.msra.mxu0 %v228
    %280 = vmatprep.subr.mxu0 0.0
    %281 = vmatpush1.msra.mxu0 %v229
    %282 = vmatprep.subr.mxu0 0.0
    %283 = vmatpush1.msra.mxu0 %v230
    %284 = vmatprep.subr.mxu0 0.0
    %285 = vmatpush1.msra.mxu0 %v231
    %286 = vmatprep.subr.mxu0 0.0
    %287 = vmatpush1.msra.mxu0 %v232
    %288 = vmatprep.subr.mxu0 0.0
    %289 = vmatpush1.msra.mxu0 0.0
    %290 = vmatprep.subr.mxu0 0.0
    %291 = vmatpush1.msra.mxu0 0.0
    %292 = vmatprep.subr.mxu0 0.0
    %293 = vmatpush1.msra.mxu0 0.0
    %294 = vmatprep.subr.mxu0 0.0
    %295 = vmatpush1.msra.mxu0 0.0
    %296 = vmatprep.subr.mxu0 0.0
    %297 = vmatpush1.msra.mxu0 0.0
    %298 = vmatprep.subr.mxu0 0.0
    %299 = vmatpush1.msra.mxu0 0.0
    %300 = vmatprep.subr.mxu0 0.0
    %301 = vmatpush1.msra.mxu0 0.0
    %302 = vmatprep.subr.mxu0 0.0
    %303 = vmatpush1.msra.mxu0 0.0
    %304 = vmatprep.subr.mxu0 0.0
    %305 = vmatpush1.msra.mxu0 0.0
    %306 = vmatprep.subr.mxu0 0.0
    %307 = vmatpush1.msra.mxu0 0.0
    %308 = vmatprep.subr.mxu0 0.0
    %309 = vmatpush1.msra.mxu0 0.0
    %310 = vmatprep.subr.mxu0 0.0
    %311 = vmatpush1.msra.mxu0 0.0
    %312 = vmatprep.subr.mxu0 0.0
    %313 = vmatpush1.msra.mxu0 0.0
    %314 = vmatprep.subr.mxu0 0.0
    %315 = vmatpush1.msra.mxu0 0.0
    %316 = vmatprep.subr.mxu0 0.0
    %317 = vmatpush1.msra.mxu0 0.0
    %318 = vmatprep.subr.mxu0 0.0
    %319 = vmatpush1.msra.mxu0 0.0
    %320 = vmatprep.subr.mxu0 0.0
    %321 = vmatpush1.msra.mxu0 0.0
    %322 = vmatprep.subr.mxu0 0.0
    %323 = vmatpush1.msra.mxu0 0.0
    %324 = vmatprep.subr.mxu0 0.0
    %325 = vmatpush1.msra.mxu0 0.0
    %326 = vmatprep.subr.mxu0 0.0
    %327 = vmatpush1.msra.mxu0 0.0
    %328 = vmatprep.subr.mxu0 0.0
    %329 = vmatpush1.msra.mxu0 0.0
    %330 = vmatprep.subr.mxu0 0.0
    %331 = vmatpush1.msra.mxu0 0.0
    %332 = vmatprep.subr.mxu0 0.0
    %333 = vmatpush1.msra.mxu0 0.0
    %334 = vmatprep.subr.mxu0 0.0
    %335 = vmatpush1.msra.mxu0 0.0
    %336 = vmatprep.mubr.f32.mxu0 0.0
    %337 = vmatmul.mubr.f32.gmra.mrb[0].mxu0 %v270
    %v338 = vpop.f32.mrb[0].mxu0
    %v339 = vadd.f32 %v238, %v338
    %v340 = vpop.f32.mrb[0].mxu0
    %341 = vdwg.mxu0
    %342 = vmax.xlane.f32.xlu0 %v339
    %v343 = vpop.xlane.xlu0 %342
    %v344 = vsub.f32 %v339, %v343
    %v345 = vmul.f32 %v344, 1.442695
    %v346 = vpow.pop %v345
    %347 = vadd.xlane.f32.xlu0 %v346
    %v348 = vpop.xlane.xlu0 %347
    %v349 = vrcp.pop %v348
    %v350 = vmul.f32 %v348, %v349
    %v351 = vsub.f32 2.0, %v350
    %v352 = vmul.f32 %v349, %v351
    %v353 = vmul.f32 %v346, %v352
    %354 = vst [vmem:[#allocation10] sm:$0xff] %v353
    // Predicated region
    $region34: #{tpu_custom_call.1} parent=1 // pred_check
      _
    $region35: #{tpu_custom_call.1} parent=1 // pred_check_branch
      %356 = sbr.rel (0) target = $region37
    $region36: #{tpu_custom_call.1} parent=1 // pred_region
      %s358 = ssub.s32 128, 128
      %359 = vsyncadd [#allocation5], %s358
      %s361 = sshll.u32 [#allocation10], 4
      %s362 = int_to_ptr.vmem [resolvable:$true] %s361
      %364 = dma.vmem_to_hbm [thread:$0]  %s362, 128, %s5, [#allocation5]
    $region37: #{tpu_custom_call.1} parent=1 // pred_fallthru
      _
    // Predicated region
    $region38: #{tpu_custom_call.1} parent=1 // pred_check
      _
    $region39: #{tpu_custom_call.1} parent=1 // pred_check_branch
      %366 = sbr.rel (0) target = $region41
    $region40: #{tpu_custom_call.1} parent=1 // pred_region
      %367 = dma.done [#allocation5], 128
    $region41: #{tpu_custom_call.1} parent=1 // pred_fallthru
      _
    %368 = vsyncpa [#allocation4], 1
    %369 = vsyncpa [#allocation9], 1
    %370 = vsyncpa [#allocation5], 1
    %371 = vsyncpa [#allocation6], 1

</llo_original>
